<compile_context>
chip_gen: v7x
topology: tpu7x:2x2x1
jax: 0.10.0
libtpu: 0.0.40
codegen_flags: <defaults>
</compile_context>

<pallas_src>
import jax
import jax.numpy as jnp
from jax.experimental import pallas as pl
from jax.experimental.pallas import tpu as pltpu

STATE_SIZE = 4   # CartPole-v0 observation_space.shape[0]
HIDDEN = 16


def critic_kernel(x_ref, w1_ref, b1_ref, w2_ref, b2_ref, w3_ref, b3_ref, out_ref):
    # x: [TB, S], w1: [S, H], w2: [H, H], w3: [H, 1], biases: [1, *]
    x = x_ref[...]                       # already f32; no redundant cast
    b1 = b1_ref[...]
    b2 = b2_ref[...]
    b3 = b3_ref[...]

    # fc1 -> tanh   (tanh lowers to the EUP; free slot next to the MXU)
    h1 = jnp.tanh(jnp.dot(x, w1_ref[...], preferred_element_type=jnp.float32) + b1)

    # fc2 -> relu6  (two VPU ops, no cross-lane work)
    h2 = jnp.dot(h1, w2_ref[...], preferred_element_type=jnp.float32) + b2
    h2 = jnp.minimum(jnp.maximum(h2, 0.0), 6.0)

    # value head
    value = jnp.dot(h2, w3_ref[...], preferred_element_type=jnp.float32) + b3

    out_ref[...] = value.astype(out_ref.dtype)


def critic_forward(state, params, *, batch_tile=128):
    """state: [B, STATE_SIZE] f32 -> state values [B, 1] f32."""
    w1, b1, w2, b2, w3, b3 = params
    B = state.shape[0]

    # Row tile over the batch: multiples of 8 sublanes, or fall back to the
    # full batch as one block when it doesn't divide evenly (tiny batches).
    tb = batch_tile if (B % batch_tile == 0) else B
    grid = (B // tb,)

    def full_block(a):
        # Tiny weights/biases: one full-extent VMEM block, same for every step.
        return pl.BlockSpec(a.shape, lambda i: (0,) * a.ndim)

    return pl.pallas_call(
        critic_kernel,
        out_shape=jax.ShapeDtypeStruct((B, 1), jnp.float32),
        grid=grid,
        in_specs=[
            pl.BlockSpec((tb, STATE_SIZE), lambda i: (i, 0)),
            full_block(w1), full_block(b1),
            full_block(w2), full_block(b2),
            full_block(w3), full_block(b3),
        ],
        out_specs=pl.BlockSpec((tb, 1), lambda i: (i, 0)),
        compiler_params=pltpu.CompilerParams(
            dimension_semantics=("parallel",),   # shards batch steps across TCs on v7x
        ),
    )(state, w1, b1, w2, b2, w3, b3)


def init_params(key):
    """Deterministic init mimicking nn.Linear default (U(-1/sqrt(fan_in), +))."""
    ks = jax.random.split(key, 6)

    def linear(kw, kb, fan_in, fan_out):
        bound = 1.0 / jnp.sqrt(jnp.float32(fan_in))
        w = jax.random.uniform(kw, (fan_in, fan_out), jnp.float32, -bound, bound)
        b = jax.random.uniform(kb, (1, fan_out), jnp.float32, -bound, bound)
        return w, b

    w1, b1 = linear(ks[0], ks[1], STATE_SIZE, HIDDEN)
    w2, b2 = linear(ks[2], ks[3], HIDDEN, HIDDEN)
    w3, b3 = linear(ks[4], ks[5], HIDDEN, 1)
    return (w1, b1, w2, b2, w3, b3)


def critic_forward_ref(state, params):
    """Pure-JAX reference for correctness checking."""
    w1, b1, w2, b2, w3, b3 = params
    h1 = jnp.tanh(state @ w1 + b1)
    h2 = jnp.clip(h1 @ w2 + b2, 0.0, 6.0)   # relu6
    return h2 @ w3 + b3


if __name__ == "__main__":
    key = jax.random.PRNGKey(0)
    k_params, k_state = jax.random.split(key)

    params = init_params(k_params)
    state = jax.random.normal(k_state, (8, STATE_SIZE), jnp.float32)  # batch of 8 states

    values = critic_forward(state, params)
    values = jax.block_until_ready(values)

    ref = critic_forward_ref(state, params)

    assert values.shape == (8, 1)
    assert jnp.allclose(values, ref, atol=1e-5, rtol=1e-5), "mismatch vs JAX reference"

    print("KERNEL_OK")
</pallas_src>

<mosaic_0001>
module attributes {stable_mosaic.version = 11 : i64} {
  func.func @critic_kernel(%arg0: i32, %arg1: memref<8x4xf32, #tpu.memory_space<vmem>>, %arg2: memref<4x16xf32, #tpu.memory_space<vmem>>, %arg3: memref<1x16xf32, #tpu.memory_space<vmem>>, %arg4: memref<16x16xf32, #tpu.memory_space<vmem>>, %arg5: memref<1x16xf32, #tpu.memory_space<vmem>>, %arg6: memref<16x1xf32, #tpu.memory_space<vmem>>, %arg7: memref<1x1xf32, #tpu.memory_space<vmem>>, %arg8: memref<8x1xf32, #tpu.memory_space<vmem>>) attributes {dimension_semantics = [#tpu.dimension_semantics<parallel>], iteration_bounds = array<i64: 1>, scalar_prefetch = 0 : i64, scratch_operands = 0 : i64, tpu.core_type = #tpu.core_type<tc>, window_params = [{transform_indices = @transform_0, window_bounds = array<i64: 8, 4>}, {pipeline_mode = #tpu.pipeline_mode<synchronous>, transform_indices = @transform_1, window_bounds = array<i64: 4, 16>}, {pipeline_mode = #tpu.pipeline_mode<synchronous>, transform_indices = @transform_2, window_bounds = array<i64: 1, 16>}, {pipeline_mode = #tpu.pipeline_mode<synchronous>, transform_indices = @transform_3, window_bounds = array<i64: 16, 16>}, {pipeline_mode = #tpu.pipeline_mode<synchronous>, transform_indices = @transform_4, window_bounds = array<i64: 1, 16>}, {pipeline_mode = #tpu.pipeline_mode<synchronous>, transform_indices = @transform_5, window_bounds = array<i64: 16, 1>}, {pipeline_mode = #tpu.pipeline_mode<synchronous>, transform_indices = @transform_6, window_bounds = array<i64: 1, 1>}, {transform_indices = @transform_7, window_bounds = array<i64: 8, 1>}]} {
    %c0 = arith.constant 0 : index
    %c0_0 = arith.constant 0 : index
    %0 = vector.load %arg1[%c0, %c0_0] : memref<8x4xf32, #tpu.memory_space<vmem>>, vector<8x4xf32>
    %c0_1 = arith.constant 0 : index
    %c0_2 = arith.constant 0 : index
    %1 = vector.load %arg3[%c0_1, %c0_2] : memref<1x16xf32, #tpu.memory_space<vmem>>, vector<1x16xf32>
    %c0_3 = arith.constant 0 : index
    %c0_4 = arith.constant 0 : index
    %2 = vector.load %arg5[%c0_3, %c0_4] : memref<1x16xf32, #tpu.memory_space<vmem>>, vector<1x16xf32>
    %c0_5 = arith.constant 0 : index
    %c0_6 = arith.constant 0 : index
    %3 = vector.load %arg7[%c0_5, %c0_6] : memref<1x1xf32, #tpu.memory_space<vmem>>, vector<1x1xf32>
    %c0_7 = arith.constant 0 : index
    %c0_8 = arith.constant 0 : index
    %4 = vector.load %arg2[%c0_7, %c0_8] : memref<4x16xf32, #tpu.memory_space<vmem>>, vector<4x16xf32>
    %cst = arith.constant dense<0.000000e+00> : vector<8x16xf32>
    %5 = tpu.matmul %0, %4, %cst {dimension_numbers = #tpu.dot_dimension_numbers<[1], [0], [0], [1], [0, 0, 1, 1], [], []>} : vector<8x4xf32>, vector<4x16xf32>, vector<8x16xf32> -> vector<8x16xf32>
    %6 = vector.broadcast %1 : vector<1x16xf32> to vector<8x16xf32>
    %7 = arith.addf %5, %6 : vector<8x16xf32>
    %8 = math.tanh %7 : vector<8x16xf32>
    %c0_9 = arith.constant 0 : index
    %c0_10 = arith.constant 0 : index
    %9 = vector.load %arg4[%c0_9, %c0_10] : memref<16x16xf32, #tpu.memory_space<vmem>>, vector<16x16xf32>
    %cst_11 = arith.constant dense<0.000000e+00> : vector<8x16xf32>
    %10 = tpu.matmul %8, %9, %cst_11 {dimension_numbers = #tpu.dot_dimension_numbers<[1], [0], [0], [1], [0, 0, 1, 1], [], []>} : vector<8x16xf32>, vector<16x16xf32>, vector<8x16xf32> -> vector<8x16xf32>
    %11 = vector.broadcast %2 : vector<1x16xf32> to vector<8x16xf32>
    %12 = arith.addf %10, %11 : vector<8x16xf32>
    %cst_12 = arith.constant 0.000000e+00 : f32
    %13 = vector.broadcast %cst_12 : f32 to vector<8x16xf32>
    %14 = arith.maximumf %12, %13 : vector<8x16xf32>
    %cst_13 = arith.constant 6.000000e+00 : f32
    %15 = vector.broadcast %cst_13 : f32 to vector<8x16xf32>
    %16 = arith.minimumf %14, %15 : vector<8x16xf32>
    %c0_14 = arith.constant 0 : index
    %c0_15 = arith.constant 0 : index
    %17 = vector.load %arg6[%c0_14, %c0_15] : memref<16x1xf32, #tpu.memory_space<vmem>>, vector<16x1xf32>
    %cst_16 = arith.constant dense<0.000000e+00> : vector<8x1xf32>
    %18 = tpu.matmul %16, %17, %cst_16 {dimension_numbers = #tpu.dot_dimension_numbers<[1], [0], [0], [1], [0, 0, 1, 1], [], []>} : vector<8x16xf32>, vector<16x1xf32>, vector<8x1xf32> -> vector<8x1xf32>
    %19 = vector.broadcast %3 : vector<1x1xf32> to vector<8x1xf32>
    %20 = arith.addf %18, %19 : vector<8x1xf32>
    %c0_17 = arith.constant 0 : index
    %c0_18 = arith.constant 0 : index
    %21 = vector.load %arg8[%c0_17, %c0_18] : memref<8x1xf32, #tpu.memory_space<vmem>>, vector<8x1xf32>
    tpu.vector_store %arg8[%c0_17, %c0_18], %20 {strides = array<i32>} : memref<8x1xf32, #tpu.memory_space<vmem>>, vector<8x1xf32>,
    return
  }
  func.func @transform_0(%arg0: i32) -> (i32, i32) {
    %c0_i32 = arith.constant 0 : i32
    %c0_i32_0 = arith.constant 0 : i32
    return %arg0, %c0_i32 : i32, i32
  }
  func.func @transform_1(%arg0: i32) -> (i32, i32) {
    %c0_i32 = arith.constant 0 : i32
    %c0_i32_0 = arith.constant 0 : i32
    %c0_i32_1 = arith.constant 0 : i32
    return %c0_i32, %c0_i32_0 : i32, i32
  }
  func.func @transform_2(%arg0: i32) -> (i32, i32) {
    %c0_i32 = arith.constant 0 : i32
    %c0_i32_0 = arith.constant 0 : i32
    %c0_i32_1 = arith.constant 0 : i32
    return %c0_i32, %c0_i32_0 : i32, i32
  }
  func.func @transform_3(%arg0: i32) -> (i32, i32) {
    %c0_i32 = arith.constant 0 : i32
    %c0_i32_0 = arith.constant 0 : i32
    %c0_i32_1 = arith.constant 0 : i32
    return %c0_i32, %c0_i32_0 : i32, i32
  }
  func.func @transform_4(%arg0: i32) -> (i32, i32) {
    %c0_i32 = arith.constant 0 : i32
    %c0_i32_0 = arith.constant 0 : i32
    %c0_i32_1 = arith.constant 0 : i32
    return %c0_i32, %c0_i32_0 : i32, i32
  }
  func.func @transform_5(%arg0: i32) -> (i32, i32) {
    %c0_i32 = arith.constant 0 : i32
    %c0_i32_0 = arith.constant 0 : i32
    %c0_i32_1 = arith.constant 0 : i32
    return %c0_i32, %c0_i32_0 : i32, i32
  }
  func.func @transform_6(%arg0: i32) -> (i32, i32) {
    %c0_i32 = arith.constant 0 : i32
    %c0_i32_0 = arith.constant 0 : i32
    %c0_i32_1 = arith.constant 0 : i32
    return %c0_i32, %c0_i32_0 : i32, i32
  }
  func.func @transform_7(%arg0: i32) -> (i32, i32) {
    %c0_i32 = arith.constant 0 : i32
    %c0_i32_0 = arith.constant 0 : i32
    return %arg0, %c0_i32 : i32, i32
  }
}

</mosaic_0001>

<llo_original>
// kernel: tpu_custom_call.1
$region0: #{tpu_custom_call.1}
  #allocation0 [shape = 'u32[]', space=smem, size = 0x4, offset = 0x4, fixed_abs, tag = 'smem constant byte address 0x4 - core index']
  #allocation1 [shape = 'u32[144,128]{1,0:T(1,128)}', space=vmem, size = 0x12000, scoped, tag = 'internal scratch']
  #allocation2 [shape = 'f32[1,1]{1,0:T(1,128)S(1)}', space=vmem, size = 0x200, scoped, tag = 'scoped memory for tpu_custom_call.1']
  %s0 = inlined_call_operand.vmem [shape: f32[8,4], index: 0, kind: input, shape index: {}]
  %s1 = inlined_call_operand.vmem [shape: f32[4,16], index: 1, kind: input, shape index: {}]
  %s2 = inlined_call_operand.vmem [shape: f32[1,16], index: 2, kind: input, shape index: {}]
  %s3 = inlined_call_operand.vmem [shape: f32[16,16], index: 3, kind: input, shape index: {}]
  %s4 = inlined_call_operand.vmem [shape: f32[1,16], index: 4, kind: input, shape index: {}]
  %s5 = inlined_call_operand.vmem [shape: f32[16,1], index: 5, kind: input, shape index: {}]
  %s6 = inlined_call_operand.<no memory space> [shape: f32[1,1], index: 6, kind: input, shape index: {}]
  %s7 = inlined_call_operand.vmem [shape: f32[8,1], index: 7, kind: output, shape index: {}]
  %s8 = sld [smem:[#allocation0]]
  $region38: #{tpu_custom_call.1} parent=0
    _
  %s10 = ssub.s32 1, %s8
  %s11 = scalar_select 0, %s10, %s8
  %v12 = vstv %s6
  %13 = vst [vmem:[#allocation2] sm:$0x1] %v12
  // Predicated region
  $region2: #{tpu_custom_call.1} parent=0 // pred_check
    _
  $region3: #{tpu_custom_call.1} parent=0 // pred_check_branch
    %15 = sbr.rel (0) target = $region5
  $region4: #{tpu_custom_call.1} parent=0 // pred_region
    _
  $region5: #{tpu_custom_call.1} parent=0 // pred_fallthru
    _
  // Predicated region
  $region6: #{tpu_custom_call.1} parent=0 // pred_check
    _
  $region7: #{tpu_custom_call.1} parent=0 // pred_check_branch
    %17 = sbr.rel (0) target = $region9
  $region8: #{tpu_custom_call.1} parent=0 // pred_region
    _
  $region9: #{tpu_custom_call.1} parent=0 // pred_fallthru
    _
  // Predicated region
  $region10: #{tpu_custom_call.1} parent=0 // pred_check
    _
  $region11: #{tpu_custom_call.1} parent=0 // pred_check_branch
    %19 = sbr.rel (0) target = $region13
  $region12: #{tpu_custom_call.1} parent=0 // pred_region
    _
  $region13: #{tpu_custom_call.1} parent=0 // pred_fallthru
    _
  // Predicated region
  $region14: #{tpu_custom_call.1} parent=0 // pred_check
    _
  $region15: #{tpu_custom_call.1} parent=0 // pred_check_branch
    %21 = sbr.rel (0) target = $region17
  $region16: #{tpu_custom_call.1} parent=0 // pred_region
    _
  $region17: #{tpu_custom_call.1} parent=0 // pred_fallthru
    _
  // Predicated region
  $region18: #{tpu_custom_call.1} parent=0 // pred_check
    _
  $region19: #{tpu_custom_call.1} parent=0 // pred_check_branch
    %23 = sbr.rel (0) target = $region21
  $region20: #{tpu_custom_call.1} parent=0 // pred_region
    _
  $region21: #{tpu_custom_call.1} parent=0 // pred_fallthru
    _
  // Predicated region
  $region22: #{tpu_custom_call.1} parent=0 // pred_check
    _
  $region23: #{tpu_custom_call.1} parent=0 // pred_check_branch
    %25 = sbr.rel (0) target = $region25
  $region24: #{tpu_custom_call.1} parent=0 // pred_region
    _
  $region25: #{tpu_custom_call.1} parent=0 // pred_fallthru
    _
  // Predicated region
  $region26: #{tpu_custom_call.1} parent=0 // pred_check
    _
  $region27: #{tpu_custom_call.1} parent=0 // pred_check_branch
    %27 = sbr.rel (0) target = $region29
  $region28: #{tpu_custom_call.1} parent=0 // pred_region
    _
  $region29: #{tpu_custom_call.1} parent=0 // pred_fallthru
    _
  %v28 = vld [vmem:[%s0] sm:$0xff]
  %v29 = vld [vmem:[%s2] sm:$0x1]
  %v30 = vld [vmem:[%s4] sm:$0x1]
  %v31 = vld [vmem:[#allocation2] sm:$0x1]
  %v32 = vld [vmem:[%s1] sm:$0xf]
  %v34 = vlaneseq
  %v35 = vshrl.u32 %v34, 7
  %v36 = vsub.s32 0, %v35
  %v37 = vrot.slane %v29, %v36
  %vm39 = vcmask 31744
  %v41 = vsel %vm39, %v28, 0
  %vm43 = vcmask 1043456
  %v45 = vsel %vm43, %v32, 0
  %47 = vmatprep.subr.mxu0 0.0
  %48 = vmatpush1.msra.mxu0 %v45
  %49 = vmatprep.subr.mxu0 0.0
  %50 = vmatpush1.msra.mxu0 0.0
  %51 = vmatprep.subr.mxu0 0.0
  %52 = vmatpush1.msra.mxu0 0.0
  %53 = vmatprep.subr.mxu0 0.0
  %54 = vmatpush1.msra.mxu0 0.0
  %55 = vmatprep.subr.mxu0 0.0
  %56 = vmatpush1.msra.mxu0 0.0
  %57 = vmatprep.subr.mxu0 0.0
  %58 = vmatpush1.msra.mxu0 0.0
  %59 = vmatprep.subr.mxu0 0.0
  %60 = vmatpush1.msra.mxu0 0.0
  %61 = vmatprep.subr.mxu0 0.0
  %62 = vmatpush1.msra.mxu0 0.0
  %63 = vmatprep.subr.mxu0 0.0
  %64 = vmatpush1.msra.mxu0 0.0
  %65 = vmatprep.subr.mxu0 0.0
  %66 = vmatpush1.msra.mxu0 0.0
  %67 = vmatprep.subr.mxu0 0.0
  %68 = vmatpush1.msra.mxu0 0.0
  %69 = vmatprep.subr.mxu0 0.0
  %70 = vmatpush1.msra.mxu0 0.0
  %71 = vmatprep.subr.mxu0 0.0
  %72 = vmatpush1.msra.mxu0 0.0
  %73 = vmatprep.subr.mxu0 0.0
  %74 = vmatpush1.msra.mxu0 0.0
  %75 = vmatprep.subr.mxu0 0.0
  %76 = vmatpush1.msra.mxu0 0.0
  %77 = vmatprep.subr.mxu0 0.0
  %78 = vmatpush1.msra.mxu0 0.0
  %79 = vmatprep.subr.mxu0 0.0
  %80 = vmatpush1.msra.mxu0 0.0
  %81 = vmatprep.subr.mxu0 0.0
  %82 = vmatpush1.msra.mxu0 0.0
  %83 = vmatprep.subr.mxu0 0.0
  %84 = vmatpush1.msra.mxu0 0.0
  %85 = vmatprep.subr.mxu0 0.0
  %86 = vmatpush1.msra.mxu0 0.0
  %87 = vmatprep.subr.mxu0 0.0
  %88 = vmatpush1.msra.mxu0 0.0
  %89 = vmatprep.subr.mxu0 0.0
  %90 = vmatpush1.msra.mxu0 0.0
  %91 = vmatprep.subr.mxu0 0.0
  %92 = vmatpush1.msra.mxu0 0.0
  %93 = vmatprep.subr.mxu0 0.0
  %94 = vmatpush1.msra.mxu0 0.0
  %95 = vmatprep.subr.mxu0 0.0
  %96 = vmatpush1.msra.mxu0 0.0
  %97 = vmatprep.subr.mxu0 0.0
  %98 = vmatpush1.msra.mxu0 0.0
  %99 = vmatprep.subr.mxu0 0.0
  %100 = vmatpush1.msra.mxu0 0.0
  %101 = vmatprep.subr.mxu0 0.0
  %102 = vmatpush1.msra.mxu0 0.0
  %103 = vmatprep.subr.mxu0 0.0
  %104 = vmatpush1.msra.mxu0 0.0
  %105 = vmatprep.subr.mxu0 0.0
  %106 = vmatpush1.msra.mxu0 0.0
  %107 = vmatprep.subr.mxu0 0.0
  %108 = vmatpush1.msra.mxu0 0.0
  %109 = vmatprep.subr.mxu0 0.0
  %110 = vmatpush1.msra.mxu0 0.0
  %111 = vmatprep.mubr.f32.mxu0 0.0
  %112 = vmatmul.mubr.f32.gmra.mrb[0].mxu0 %v41
  %v113 = vpop.f32.mrb[0].mxu0
  %v114 = vadd.f32 %v37, %v113
  %v115 = vpop.f32.mrb[0].mxu0
  %116 = vdwg.mxu0
  %v117 = vtanh.pop %v114
  %v118 = vld [vmem:[%s3] sm:$0xff]
  %v119 = vld [vmem:[%s3 + $0x8] sm:$0xff]
  %v121 = vlaneseq
  %v122 = vshrl.u32 %v121, 7
  %v123 = vsub.s32 0, %v122
  %v124 = vrot.slane %v30, %v123
  %vm126 = vcmask 130048
  %v128 = vsel %vm126, %v117, 0
  %130 = vmatprep.subr.mxu0 0.0
  %131 = vmatpush1.msra.mxu0 %v118
  %132 = vmatprep.subr.mxu0 0.0
  %133 = vmatpush1.msra.mxu0 %v119
  %134 = vmatprep.subr.mxu0 0.0
  %135 = vmatpush1.msra.mxu0 0.0
  %136 = vmatprep.subr.mxu0 0.0
  %137 = vmatpush1.msra.mxu0 0.0
  %138 = vmatprep.subr.mxu0 0.0
  %139 = vmatpush1.msra.mxu0 0.0
  %140 = vmatprep.subr.mxu0 0.0
  %141 = vmatpush1.msra.mxu0 0.0
  %142 = vmatprep.subr.mxu0 0.0
  %143 = vmatpush1.msra.mxu0 0.0
  %144 = vmatprep.subr.mxu0 0.0
  %145 = vmatpush1.msra.mxu0 0.0
  %146 = vmatprep.subr.mxu0 0.0
  %147 = vmatpush1.msra.mxu0 0.0
  %148 = vmatprep.subr.mxu0 0.0
  %149 = vmatpush1.msra.mxu0 0.0
  %150 = vmatprep.subr.mxu0 0.0
  %151 = vmatpush1.msra.mxu0 0.0
  %152 = vmatprep.subr.mxu0 0.0
  %153 = vmatpush1.msra.mxu0 0.0
  %154 = vmatprep.subr.mxu0 0.0
  %155 = vmatpush1.msra.mxu0 0.0
  %156 = vmatprep.subr.mxu0 0.0
  %157 = vmatpush1.msra.mxu0 0.0
  %158 = vmatprep.subr.mxu0 0.0
  %159 = vmatpush1.msra.mxu0 0.0
  %160 = vmatprep.subr.mxu0 0.0
  %161 = vmatpush1.msra.mxu0 0.0
  %162 = vmatprep.subr.mxu0 0.0
  %163 = vmatpush1.msra.mxu0 0.0
  %164 = vmatprep.subr.mxu0 0.0
  %165 = vmatpush1.msra.mxu0 0.0
  %166 = vmatprep.subr.mxu0 0.0
  %167 = vmatpush1.msra.mxu0 0.0
  %168 = vmatprep.subr.mxu0 0.0
  %169 = vmatpush1.msra.mxu0 0.0
  %170 = vmatprep.subr.mxu0 0.0
  %171 = vmatpush1.msra.mxu0 0.0
  %172 = vmatprep.subr.mxu0 0.0
  %173 = vmatpush1.msra.mxu0 0.0
  %174 = vmatprep.subr.mxu0 0.0
  %175 = vmatpush1.msra.mxu0 0.0
  %176 = vmatprep.subr.mxu0 0.0
  %177 = vmatpush1.msra.mxu0 0.0
  %178 = vmatprep.subr.mxu0 0.0
  %179 = vmatpush1.msra.mxu0 0.0
  %180 = vmatprep.subr.mxu0 0.0
  %181 = vmatpush1.msra.mxu0 0.0
  %182 = vmatprep.subr.mxu0 0.0
  %183 = vmatpush1.msra.mxu0 0.0
  %184 = vmatprep.subr.mxu0 0.0
  %185 = vmatpush1.msra.mxu0 0.0
  %186 = vmatprep.subr.mxu0 0.0
  %187 = vmatpush1.msra.mxu0 0.0
  %188 = vmatprep.subr.mxu0 0.0
  %189 = vmatpush1.msra.mxu0 0.0
  %190 = vmatprep.subr.mxu0 0.0
  %191 = vmatpush1.msra.mxu0 0.0
  %192 = vmatprep.subr.mxu0 0.0
  %193 = vmatpush1.msra.mxu0 0.0
  %194 = vmatprep.mubr.f32.mxu0 0.0
  %195 = vmatmul.mubr.f32.gmra.mrb[0].mxu0 %v128
  %v196 = vpop.f32.mrb[0].mxu0
  %v197 = vadd.f32 %v124, %v196
  %v198 = vpop.f32.mrb[0].mxu0
  %199 = vdwg.mxu0
  %v200 = vmax.f32 %v197, 0.0
  %v201 = vmin.f32 %v200, 6.0
  %v202 = vld [vmem:[%s5] sm:$0xff]
  %v203 = vld [vmem:[%s5 + $0x8] sm:$0xff]
  %v205 = vlaneseq
  %v206 = vshrl.u32 %v205, 7
  %v207 = vsub.s32 0, %v206
  %v208 = vrot.slane %v31, %v207
  %v211 = vsel %vm126, %v201, 0
  %213 = vmatprep.subr.mxu0 0.0
  %214 = vmatpush1.msra.mxu0 %v202
  %215 = vmatprep.subr.mxu0 0.0
  %216 = vmatpush1.msra.mxu0 %v203
  %217 = vmatprep.subr.mxu0 0.0
  %218 = vmatpush1.msra.mxu0 0.0
  %219 = vmatprep.subr.mxu0 0.0
  %220 = vmatpush1.msra.mxu0 0.0
  %221 = vmatprep.subr.mxu0 0.0
  %222 = vmatpush1.msra.mxu0 0.0
  %223 = vmatprep.subr.mxu0 0.0
  %224 = vmatpush1.msra.mxu0 0.0
  %225 = vmatprep.subr.mxu0 0.0
  %226 = vmatpush1.msra.mxu0 0.0
  %227 = vmatprep.subr.mxu0 0.0
  %228 = vmatpush1.msra.mxu0 0.0
  %229 = vmatprep.subr.mxu0 0.0
  %230 = vmatpush1.msra.mxu0 0.0
  %231 = vmatprep.subr.mxu0 0.0
  %232 = vmatpush1.msra.mxu0 0.0
  %233 = vmatprep.subr.mxu0 0.0
  %234 = vmatpush1.msra.mxu0 0.0
  %235 = vmatprep.subr.mxu0 0.0
  %236 = vmatpush1.msra.mxu0 0.0
  %237 = vmatprep.subr.mxu0 0.0
  %238 = vmatpush1.msra.mxu0 0.0
  %239 = vmatprep.subr.mxu0 0.0
  %240 = vmatpush1.msra.mxu0 0.0
  %241 = vmatprep.subr.mxu0 0.0
  %242 = vmatpush1.msra.mxu0 0.0
  %243 = vmatprep.subr.mxu0 0.0
  %244 = vmatpush1.msra.mxu0 0.0
  %245 = vmatprep.subr.mxu0 0.0
  %246 = vmatpush1.msra.mxu0 0.0
  %247 = vmatprep.subr.mxu0 0.0
  %248 = vmatpush1.msra.mxu0 0.0
  %249 = vmatprep.subr.mxu0 0.0
  %250 = vmatpush1.msra.mxu0 0.0
  %251 = vmatprep.subr.mxu0 0.0
  %252 = vmatpush1.msra.mxu0 0.0
  %253 = vmatprep.subr.mxu0 0.0
  %254 = vmatpush1.msra.mxu0 0.0
  %255 = vmatprep.subr.mxu0 0.0
  %256 = vmatpush1.msra.mxu0 0.0
  %257 = vmatprep.subr.mxu0 0.0
  %258 = vmatpush1.msra.mxu0 0.0
  %259 = vmatprep.subr.mxu0 0.0
  %260 = vmatpush1.msra.mxu0 0.0
  %261 = vmatprep.subr.mxu0 0.0
  %262 = vmatpush1.msra.mxu0 0.0
  %263 = vmatprep.subr.mxu0 0.0
  %264 = vmatpush1.msra.mxu0 0.0
  %265 = vmatprep.subr.mxu0 0.0
  %266 = vmatpush1.msra.mxu0 0.0
  %267 = vmatprep.subr.mxu0 0.0
  %268 = vmatpush1.msra.mxu0 0.0
  %269 = vmatprep.subr.mxu0 0.0
  %270 = vmatpush1.msra.mxu0 0.0
  %271 = vmatprep.subr.mxu0 0.0
  %272 = vmatpush1.msra.mxu0 0.0
  %273 = vmatprep.subr.mxu0 0.0
  %274 = vmatpush1.msra.mxu0 0.0
  %275 = vmatprep.subr.mxu0 0.0
  %276 = vmatpush1.msra.mxu0 0.0
  %277 = vmatprep.mubr.f32.mxu0 0.0
  %278 = vmatmul.mubr.f32.gmra.mrb[0].mxu0 %v211
  %v279 = vpop.f32.mrb[0].mxu0
  %v280 = vadd.f32 %v208, %v279
  %v281 = vpop.f32.mrb[0].mxu0
  %282 = vdwg.mxu0
  %vm283 = vcmask 7168
  %284 = vst.msk [vmem:[%s7] sm:$0xff] %vm283, %v280
  // Predicated region
  $region30: #{tpu_custom_call.1} parent=0 // pred_check
    _
  $region31: #{tpu_custom_call.1} parent=0 // pred_check_branch
    %286 = sbr.rel (0) target = $region33
  $region32: #{tpu_custom_call.1} parent=0 // pred_region
    _
  $region33: #{tpu_custom_call.1} parent=0 // pred_fallthru
    _
  // Predicated region
  $region34: #{tpu_custom_call.1} parent=0 // pred_check
    _
  $region35: #{tpu_custom_call.1} parent=0 // pred_check_branch
    %288 = sbr.rel (0) target = $region37
  $region36: #{tpu_custom_call.1} parent=0 // pred_region
    _
  $region37: #{tpu_custom_call.1} parent=0 // pred_fallthru
    _

</llo_original>
